<compile_context>
chip_gen: v7x
topology: tpu7x:2x2x1
jax: 0.10.0
libtpu: 0.0.40
codegen_flags: <defaults>
</compile_context>

<pallas_src>
import jax
import jax.numpy as jnp
from jax.experimental import pallas as pl
from jax.experimental.pallas import tpu as pltpu


def _mixhop_kernel(x_ref, adj_ref, w_ref, out_ref, p_ref):
    """One grid step = one hop j (sequential 'arbitrary' axis).

    x_ref   : (N, C_pad)      bf16  bias-augmented, zero-padded features
    adj_ref : (N, N)          bf16  dense adjacency
    w_ref   : (C_pad, C_out)  bf16  hop-j weight slab [W_j; b_j; 0...]
    out_ref : (N, C_out)      f32   hop-j output slab
    p_ref   : (N, C_pad)      bf16  carried propagation p_j = adj^j @ [x,1,0...]
    """
    j = pl.program_id(0)

    # Hop 0: project straight from x (already bf16); seed the carry.
    @pl.when(j == 0)
    def _():
        p_ref[...] = x_ref[...]
        out_ref[...] = jnp.dot(
            x_ref[...], w_ref[...], preferred_element_type=jnp.float32
        ).astype(out_ref.dtype)

    # Hop j > 0: advance the carry once (p <- adj @ p) and project.  The dot
    # result is fully materialized and cast to bf16 exactly once; that single
    # value feeds both the carry store and the projection matmul.
    @pl.when(j > 0)
    def _():
        p_new = jnp.dot(
            adj_ref[...], p_ref[...], preferred_element_type=jnp.float32
        ).astype(jnp.bfloat16)
        p_ref[...] = p_new
        out_ref[...] = jnp.dot(
            p_new, w_ref[...], preferred_element_type=jnp.float32
        ).astype(out_ref.dtype)


def mixhop_forward(x, adj, weights, biases, hops):
    """x: [N, C_in], adj: [N, N] dense,
    weights: [hops+1, C_in, C_out] (pre-transposed vs. torch Linear),
    biases: [hops+1, C_out]."""
    N, C_in = x.shape
    C_out = weights.shape[-1]
    n_hops = hops + 1

    # Homogeneous-coordinate augmentation (absorb bias) + lane-dense padding:
    # carry width padded to a multiple of 128 so p is fully lane-dense.
    C_pad = pl.cdiv(C_in + 1, 128) * 128
    pad = C_pad - (C_in + 1)

    x_aug = jnp.concatenate(
        [x.astype(jnp.bfloat16),
         jnp.ones((N, 1), dtype=jnp.bfloat16),
         jnp.zeros((N, pad), dtype=jnp.bfloat16)], axis=1)
    w_aug = jnp.concatenate(
        [weights.astype(jnp.bfloat16),
         biases[:, None, :].astype(jnp.bfloat16),
         jnp.zeros((n_hops, pad, C_out), dtype=jnp.bfloat16)], axis=1)
    adj_bf = adj.astype(jnp.bfloat16)

    # Explicit VMEM budget: single-buffered adj & x, double-buffered W & out,
    # bf16 carry scratch; generous headroom, capped below physical.
    vmem_bytes = (N * N * 2                  # adj   (Buffered(1))
                  + N * C_pad * 2            # x_aug (Buffered(1))
                  + 2 * C_pad * C_out * 2    # W slab (double-buffered)
                  + 2 * N * C_out * 4        # out slab (double-buffered)
                  + N * C_pad * 2)           # carry scratch
    vmem_limit = int(min(100 * 1024 * 1024,
                         max(32 * 1024 * 1024, 2 * vmem_bytes)))

    out = pl.pallas_call(
        _mixhop_kernel,
        out_shape=jax.ShapeDtypeStruct((n_hops, N, C_out), jnp.float32),
        grid_spec=pltpu.PrefetchScalarGridSpec(
            num_scalar_prefetch=0,
            grid=(n_hops,),
            in_specs=[
                # Grid-invariant inputs: constant index_map -> single buffer.
                pl.BlockSpec((N, C_pad), lambda j: (0, 0),
                             pipeline_mode=pl.Buffered(1)),       # [x, 1, 0..]
                pl.BlockSpec((N, N), lambda j: (0, 0),
                             pipeline_mode=pl.Buffered(1)),       # adj
                # Per-hop weight slab (leading dim squeezed out).
                pl.BlockSpec((None, C_pad, C_out), lambda j: (j, 0, 0)),
            ],
            out_specs=pl.BlockSpec((None, N, C_out), lambda j: (j, 0, 0)),
            scratch_shapes=[pltpu.VMEM((N, C_pad), jnp.bfloat16)],  # carried p
        ),
        compiler_params=pltpu.CompilerParams(
            dimension_semantics=("arbitrary",),
            vmem_limit_bytes=vmem_limit),
    )(x_aug, adj_bf, w_aug)

    # (n_hops, N, C_out) -> [N, (hops+1)*C_out], matching torch.cat(xs, dim=1).
    return jnp.transpose(out, (1, 0, 2)).reshape(N, n_hops * C_out)


def mixhop_reference(x, adj, weights, biases, hops):
    xs = []
    for j in range(hops + 1):
        h = x @ weights[j] + biases[j]
        for _ in range(j):
            h = adj @ h
        xs.append(h)
    return jnp.concatenate(xs, axis=1)


if __name__ == "__main__":
    key = jax.random.PRNGKey(0)
    N, C_in, C_out, hops = 128, 64, 32, 2

    k_x, k_a, k_w, k_b = jax.random.split(key, 4)
    x = jax.random.normal(k_x, (N, C_in), dtype=jnp.float32)
    adj = jax.random.uniform(k_a, (N, N), dtype=jnp.float32) * 0.05

    # Deterministic Linear init (PyTorch-style U(-1/sqrt(in), 1/sqrt(in)));
    # weights stored pre-transposed to [hops+1, C_in, C_out].
    bound = 1.0 / jnp.sqrt(jnp.float32(C_in))
    weights = jax.random.uniform(
        k_w, (hops + 1, C_in, C_out), dtype=jnp.float32,
        minval=-bound, maxval=bound)
    biases = jax.random.uniform(
        k_b, (hops + 1, C_out), dtype=jnp.float32,
        minval=-bound, maxval=bound)

    out = mixhop_forward(x, adj, weights, biases, hops)
    out = jax.block_until_ready(out)

    ref = mixhop_reference(x, adj, weights, biases, hops)
    assert out.shape == (N, (hops + 1) * C_out)
    # bf16 MXU operands / bf16 carry (f32 accumulation) vs. the f32 reference.
    assert jnp.allclose(out, ref, atol=1e-1, rtol=1e-1), (
        float(jnp.max(jnp.abs(out - ref))))

    print("KERNEL_OK")
</pallas_src>

<mosaic_0001>
module attributes {stable_mosaic.version = 11 : i64} {
  func.func @_mixhop_kernel(%arg0: i32, %arg1: memref<128x128xbf16, #tpu.memory_space<vmem>>, %arg2: memref<128x128xbf16, #tpu.memory_space<vmem>>, %arg3: memref<1x128x32xbf16, #tpu.memory_space<vmem>>, %arg4: memref<1x128x32xf32, #tpu.memory_space<vmem>>, %arg5: memref<128x128xbf16, #tpu.memory_space<vmem>>) attributes {dimension_semantics = [#tpu.dimension_semantics<arbitrary>], iteration_bounds = array<i64: 3>, scalar_prefetch = 0 : i64, scratch_operands = 1 : i64, tpu.core_type = #tpu.core_type<tc>, window_params = [{pipeline_mode = #tpu.pipeline_mode<synchronous>, transform_indices = @transform_0, window_bounds = array<i64: 128, 128>}, {pipeline_mode = #tpu.pipeline_mode<synchronous>, transform_indices = @transform_1, window_bounds = array<i64: 128, 128>}, {transform_indices = @transform_2, window_bounds = array<i64: 1, 128, 32>}, {transform_indices = @transform_3, window_bounds = array<i64: 1, 128, 32>}]} {
    %c0_i32 = arith.constant 0 : i32
    %0 = arith.cmpi eq, %arg0, %c0_i32 : i32
    %1 = arith.extui %0 : i1 to i32
    %c0_i32_0 = arith.constant 0 : i32
    %2 = arith.cmpi ne, %1, %c0_i32_0 : i32
    scf.if %2 {
      %c0 = arith.constant 0 : index
      %c0_3 = arith.constant 0 : index
      %6 = vector.load %arg1[%c0, %c0_3] : memref<128x128xbf16, #tpu.memory_space<vmem>>, vector<128x128xbf16>
      %c0_4 = arith.constant 0 : index
      %c0_5 = arith.constant 0 : index
      %7 = vector.load %arg5[%c0_4, %c0_5] : memref<128x128xbf16, #tpu.memory_space<vmem>>, vector<128x128xbf16>
      tpu.vector_store %arg5[%c0_4, %c0_5], %6 {strides = array<i32>} : memref<128x128xbf16, #tpu.memory_space<vmem>>, vector<128x128xbf16>,
      %c0_6 = arith.constant 0 : index
      %c0_7 = arith.constant 0 : index
      %8 = vector.load %arg1[%c0_6, %c0_7] : memref<128x128xbf16, #tpu.memory_space<vmem>>, vector<128x128xbf16>
      %c0_8 = arith.constant 0 : index
      %c0_9 = arith.constant 0 : index
      %c0_10 = arith.constant 0 : index
      %9 = vector.load %arg3[%c0_8, %c0_9, %c0_10] : memref<1x128x32xbf16, #tpu.memory_space<vmem>>, vector<1x128x32xbf16>
      %10 = vector.shape_cast %9 : vector<1x128x32xbf16> to vector<128x32xbf16>
      %cst = arith.constant dense<0.000000e+00> : vector<128x32xf32>
      %11 = tpu.matmul %8, %10, %cst {dimension_numbers = #tpu.dot_dimension_numbers<[1], [0], [0], [1], [0, 0, 1, 1], [], []>} : vector<128x128xbf16>, vector<128x32xbf16>, vector<128x32xf32> -> vector<128x32xf32>
      %c0_11 = arith.constant 0 : index
      %c0_12 = arith.constant 0 : index
      %c0_13 = arith.constant 0 : index
      %12 = vector.load %arg4[%c0_11, %c0_12, %c0_13] : memref<1x128x32xf32, #tpu.memory_space<vmem>>, vector<1x128x32xf32>
      %13 = vector.shape_cast %12 : vector<1x128x32xf32> to vector<128x32xf32>
      %14 = vector.shape_cast %11 : vector<128x32xf32> to vector<1x128x32xf32>
      tpu.vector_store %arg4[%c0_11, %c0_12, %c0_13], %14 {strides = array<i32>} : memref<1x128x32xf32, #tpu.memory_space<vmem>>, vector<1x128x32xf32>,
    } else {
    }
    %c0_i32_1 = arith.constant 0 : i32
    %3 = arith.cmpi sgt, %arg0, %c0_i32_1 : i32
    %4 = arith.extui %3 : i1 to i32
    %c0_i32_2 = arith.constant 0 : i32
    %5 = arith.cmpi ne, %4, %c0_i32_2 : i32
    scf.if %5 {
      %c0 = arith.constant 0 : index
      %c0_3 = arith.constant 0 : index
      %6 = vector.load %arg2[%c0, %c0_3] : memref<128x128xbf16, #tpu.memory_space<vmem>>, vector<128x128xbf16>
      %c0_4 = arith.constant 0 : index
      %c0_5 = arith.constant 0 : index
      %7 = vector.load %arg5[%c0_4, %c0_5] : memref<128x128xbf16, #tpu.memory_space<vmem>>, vector<128x128xbf16>
      %cst = arith.constant dense<0.000000e+00> : vector<128x128xf32>
      %8 = tpu.matmul %6, %7, %cst {dimension_numbers = #tpu.dot_dimension_numbers<[1], [0], [0], [1], [0, 0, 1, 1], [], []>} : vector<128x128xbf16>, vector<128x128xbf16>, vector<128x128xf32> -> vector<128x128xf32>
      %9 = arith.truncf %8 : vector<128x128xf32> to vector<128x128xbf16>
      %c0_6 = arith.constant 0 : index
      %c0_7 = arith.constant 0 : index
      %10 = vector.load %arg5[%c0_6, %c0_7] : memref<128x128xbf16, #tpu.memory_space<vmem>>, vector<128x128xbf16>
      tpu.vector_store %arg5[%c0_6, %c0_7], %9 {strides = array<i32>} : memref<128x128xbf16, #tpu.memory_space<vmem>>, vector<128x128xbf16>,
      %c0_8 = arith.constant 0 : index
      %c0_9 = arith.constant 0 : index
      %c0_10 = arith.constant 0 : index
      %11 = vector.load %arg3[%c0_8, %c0_9, %c0_10] : memref<1x128x32xbf16, #tpu.memory_space<vmem>>, vector<1x128x32xbf16>
      %12 = vector.shape_cast %11 : vector<1x128x32xbf16> to vector<128x32xbf16>
      %cst_11 = arith.constant dense<0.000000e+00> : vector<128x32xf32>
      %13 = tpu.matmul %9, %12, %cst_11 {dimension_numbers = #tpu.dot_dimension_numbers<[1], [0], [0], [1], [0, 0, 1, 1], [], []>} : vector<128x128xbf16>, vector<128x32xbf16>, vector<128x32xf32> -> vector<128x32xf32>
      %c0_12 = arith.constant 0 : index
      %c0_13 = arith.constant 0 : index
      %c0_14 = arith.constant 0 : index
      %14 = vector.load %arg4[%c0_12, %c0_13, %c0_14] : memref<1x128x32xf32, #tpu.memory_space<vmem>>, vector<1x128x32xf32>
      %15 = vector.shape_cast %14 : vector<1x128x32xf32> to vector<128x32xf32>
      %16 = vector.shape_cast %13 : vector<128x32xf32> to vector<1x128x32xf32>
      tpu.vector_store %arg4[%c0_12, %c0_13, %c0_14], %16 {strides = array<i32>} : memref<1x128x32xf32, #tpu.memory_space<vmem>>, vector<1x128x32xf32>,
    } else {
    }
    return
  }
  func.func @transform_0(%arg0: i32) -> (i32, i32) {
    %c0_i32 = arith.constant 0 : i32
    %c0_i32_0 = arith.constant 0 : i32
    %c0_i32_1 = arith.constant 0 : i32
    return %c0_i32, %c0_i32_0 : i32, i32
  }
  func.func @transform_1(%arg0: i32) -> (i32, i32) {
    %c0_i32 = arith.constant 0 : i32
    %c0_i32_0 = arith.constant 0 : i32
    %c0_i32_1 = arith.constant 0 : i32
    return %c0_i32, %c0_i32_0 : i32, i32
  }
  func.func @transform_2(%arg0: i32) -> (i32, i32, i32) {
    %c0_i32 = arith.constant 0 : i32
    %c0_i32_0 = arith.constant 0 : i32
    %c0_i32_1 = arith.constant 0 : i32
    return %arg0, %c0_i32, %c0_i32_0 : i32, i32, i32
  }
  func.func @transform_3(%arg0: i32) -> (i32, i32, i32) {
    %c0_i32 = arith.constant 0 : i32
    %c0_i32_0 = arith.constant 0 : i32
    %c0_i32_1 = arith.constant 0 : i32
    return %arg0, %c0_i32, %c0_i32_0 : i32, i32, i32
  }
}

</mosaic_0001>

<llo_original>
// kernel: tpu_custom_call.1
$region0: #{tpu_custom_call.1}
  #allocation0 [shape = 'u32[]', space=smem, size = 0x4, offset = 0x4, fixed_abs, tag = 'smem constant byte address 0x4 - core index']
  #allocation1 [shape = 'u32[144,128]{1,0:T(1,128)}', space=vmem, size = 0x12000, scoped, tag = 'internal scratch']
  #allocation2 [shape = 'bf16[128,128]{1,0:T(16,128)(2,1)}', space=vmem, size = 0x8000, scoped, tag = 'scratch operand']
  %s0 = inlined_call_operand.vmem [shape: bf16[128,128], index: 0, kind: input, shape index: {}]
  %s1 = inlined_call_operand.vmem [shape: bf16[128,128], index: 1, kind: input, shape index: {}]
  %s2 = inlined_call_operand.vmem [shape: bf16[3,128,32], index: 2, kind: input, shape index: {}]
  %s3 = inlined_call_operand.vmem [shape: f32[3,128,32], index: 3, kind: output, shape index: {}]
  %s4 = sld [smem:[#allocation0]]
  $region53: #{tpu_custom_call.1} parent=0
    _
  %s6 = ssub.s32 1, %s4
  %s7 = scalar_select 0, %s6, %s4
  loop: start=0, step=1, limit=5
  $region2: #{tpu_custom_call.1} parent=0 // loop_pre_header
    _
  $region3: #{tpu_custom_call.1} parent=0 // loop_header
    %s9 = sphi 0, %s13
    %p10 = scmp.ge.s32.totalorder %s9, 5
    %s17 = sphi 0, %s17
    %s19 = sphi 0, %s17
    %s20 = sphi 0, %s19
    %s34 = sphi 0, %s20
    %s38 = sphi 0, %s38
    %s40 = sphi 0, %s38
    %s41 = sphi 0, %s40
    %s55 = sphi 0, %s41
    %s61 = sphi 0, %s63
    %s64 = sphi 0, %s61
    %s65 = sphi 0, %s64
    %s81 = sphi 0, %s65
    %s87 = sphi 0, %s89
    %s90 = sphi 0, %s87
    %s91 = sphi 0, %s90
    %s107 = sphi 0, %s91
  $region4: #{tpu_custom_call.1} parent=0 // loop_header_branch
    %12 = sbr.rel (%p10) target = $region8
  $region5: #{tpu_custom_call.1} parent=0 // loop_body
    %s14 = ssub.s32 %s9, 1
    %s15 = ssub.s32 %s9, 2
    %s16 = sadd.s32 %s9, 1
    %s18 = sadd.s32 %s17, 1
    %p21 = scmp.eq.s32.totalorder %s9, 2
    %p22 = scmp.ne.s32.totalorder %s17, %s19
    %p23 = scmp.eq.s32.totalorder %s9, 0
    %p24 = por %p22, %p23
    %p25 = scmp.ne.s32.totalorder %s17, %s19
    %p26 = scmp.eq.s32.totalorder %s14, 2
    %p27 = por %p25, %p26
    %p28 = scmp.ne.s32.totalorder %s19, %s20
    %p29 = scmp.eq.s32.totalorder %s14, 0
    %p30 = por %p28, %p29
    %p31 = scmp.ne.s32.totalorder %s19, %s20
    %p32 = scmp.eq.s32.totalorder %s15, 2
    %p33 = por %p31, %p32
    %p35 = scmp.ne.s32.totalorder %s20, %s34
    %p36 = scmp.eq.s32.totalorder %s15, 0
    %p37 = por %p35, %p36
    %s39 = sadd.s32 %s38, 1
    %p42 = scmp.eq.s32.totalorder %s9, 2
    %p43 = scmp.ne.s32.totalorder %s38, %s40
    %p44 = scmp.eq.s32.totalorder %s9, 0
    %p45 = por %p43, %p44
    %p46 = scmp.ne.s32.totalorder %s38, %s40
    %p47 = scmp.eq.s32.totalorder %s14, 2
    %p48 = por %p46, %p47
    %p49 = scmp.ne.s32.totalorder %s40, %s41
    %p50 = scmp.eq.s32.totalorder %s14, 0
    %p51 = por %p49, %p50
    %p52 = scmp.ne.s32.totalorder %s40, %s41
    %p53 = scmp.eq.s32.totalorder %s15, 2
    %p54 = por %p52, %p53
    %p56 = scmp.ne.s32.totalorder %s41, %s55
    %p57 = scmp.eq.s32.totalorder %s15, 0
    %p58 = por %p56, %p57
    %s59 = ssub.s32 %s9, %s16
    %p60 = scmp.eq.s32.totalorder %s59, 0
    %s62 = sadd.s32 %s61, 1
    %s63 = scalar_select %p60, %s61, %s62
    %p66 = pneg %p60
    %p67 = scmp.eq.s32.totalorder %s9, 2
    %p68 = por %p66, %p67
    %p69 = scmp.ne.s32.totalorder %s61, %s64
    %p70 = scmp.eq.s32.totalorder %s9, 0
    %p71 = por %p69, %p70
    %p72 = scmp.ne.s32.totalorder %s61, %s64
    %p73 = scmp.eq.s32.totalorder %s14, 2
    %p74 = por %p72, %p73
    %p75 = scmp.ne.s32.totalorder %s64, %s65
    %p76 = scmp.eq.s32.totalorder %s14, 0
    %p77 = por %p75, %p76
    %p78 = scmp.ne.s32.totalorder %s64, %s65
    %p79 = scmp.eq.s32.totalorder %s15, 2
    %p80 = por %p78, %p79
    %p82 = scmp.ne.s32.totalorder %s65, %s81
    %p83 = scmp.eq.s32.totalorder %s15, 0
    %p84 = por %p82, %p83
    %s85 = ssub.s32 %s9, %s16
    %p86 = scmp.eq.s32.totalorder %s85, 0
    %s88 = sadd.s32 %s87, 1
    %s89 = scalar_select %p86, %s87, %s88
    %p92 = pneg %p86
    %p93 = scmp.eq.s32.totalorder %s9, 2
    %p94 = por %p92, %p93
    %p95 = scmp.ne.s32.totalorder %s87, %s90
    %p96 = scmp.eq.s32.totalorder %s9, 0
    %p97 = por %p95, %p96
    %p98 = scmp.ne.s32.totalorder %s87, %s90
    %p99 = scmp.eq.s32.totalorder %s14, 2
    %p100 = por %p98, %p99
    %p101 = scmp.ne.s32.totalorder %s90, %s91
    %p102 = scmp.eq.s32.totalorder %s14, 0
    %p103 = por %p101, %p102
    %p104 = scmp.ne.s32.totalorder %s90, %s91
    %p105 = scmp.eq.s32.totalorder %s15, 2
    %p106 = por %p104, %p105
    %p108 = scmp.ne.s32.totalorder %s91, %s107
    %p109 = scmp.eq.s32.totalorder %s15, 0
    %p110 = por %p108, %p109
    %p111 = scmp.le.s32.totalorder 1, %s9
    %p112 = scmp.lt.s32.totalorder %s9, 4
    %p113 = pnand %p111, %p112
    %p114 = pneg %p113
    // Predicated region
    $region9: #{tpu_custom_call.1} parent=5 // pred_check
      _
    $region10: #{tpu_custom_call.1} parent=5 // pred_check_branch
      %116 = sbr.rel (%p113) target = $region12
    $region11: #{tpu_custom_call.1} parent=5 // pred_region
      %s117 = ssub.s32 %s9, 1
      // Predicated region
      $region13: #{tpu_custom_call.1} parent=11 // pred_check
        %p118 = pneg %p30
      $region14: #{tpu_custom_call.1} parent=11 // pred_check_branch
        %120 = sbr.rel (%p118) target = $region16
      $region15: #{tpu_custom_call.1} parent=11 // pred_region
        _
      $region16: #{tpu_custom_call.1} parent=11 // pred_fallthru
        _
      // Predicated region
      $region17: #{tpu_custom_call.1} parent=11 // pred_check
        %p121 = pneg %p51
      $region18: #{tpu_custom_call.1} parent=11 // pred_check_branch
        %123 = sbr.rel (%p121) target = $region20
      $region19: #{tpu_custom_call.1} parent=11 // pred_region
        _
      $region20: #{tpu_custom_call.1} parent=11 // pred_fallthru
        _
    $region12: #{tpu_custom_call.1} parent=5 // pred_fallthru
      _
    %p124 = scmp.lt.s32.totalorder %s9, 3
    // Predicated region
    $region21: #{tpu_custom_call.1} parent=5 // pred_check
      %p125 = pneg %p124
    $region22: #{tpu_custom_call.1} parent=5 // pred_check_branch
      %127 = sbr.rel (%p125) target = $region24
    $region23: #{tpu_custom_call.1} parent=5 // pred_region
      // Predicated region
      $region25: #{tpu_custom_call.1} parent=23 // pred_check
        %p128 = pneg %p71
      $region26: #{tpu_custom_call.1} parent=23 // pred_check_branch
        %130 = sbr.rel (%p128) target = $region28
      $region27: #{tpu_custom_call.1} parent=23 // pred_region
        %p131 = scmp.lt.s32.totalorder %s9, 2
        %s132 = scalar_select %p131, %s9, 2
        %s133 = smul.addr %s132, 16
        %s134 = smul.addr %s133, 4
        %s135 = scalar_lea.vmem %s2, %s134
      $region28: #{tpu_custom_call.1} parent=23 // pred_fallthru
        _
    $region24: #{tpu_custom_call.1} parent=5 // pred_fallthru
      _
    %p136 = scmp.le.s32.totalorder 1, %s9
    %p137 = scmp.lt.s32.totalorder %s9, 4
    %p138 = pnand %p136, %p137
    %p139 = pneg %p138
    // Predicated region
    $region29: #{tpu_custom_call.1} parent=5 // pred_check
      _
    $region30: #{tpu_custom_call.1} parent=5 // pred_check_branch
      %141 = sbr.rel (%p138) target = $region32
    $region31: #{tpu_custom_call.1} parent=5 // pred_region
      %s142 = ssub.s32 %s9, 1
      %p143 = pneg %p30
      %p144 = pneg %p27
      %p145 = pneg %p51
      %p146 = pneg %p48
      %p147 = scmp.lt.s32.totalorder %s14, 2
      %s148 = scalar_select %p147, %s14, 2
      %s149 = smul.addr %s148, 16
      %s150 = smul.addr %s149, 4
      %s151 = scalar_lea.vmem %s2, %s150
      %p152 = pneg %p77
      %p153 = pneg %p74
      %p154 = pneg %p103
      %p155 = pneg %p100
      %p156 = scmp.lt.s32.totalorder %s14, 2
      %s157 = scalar_select %p156, %s14, 2
      %s158 = smul.addr %s157, 16
      %s159 = smul.addr %s158, 8
      %s160 = scalar_lea.vmem %s3, %s159
      %p161 = scmp.lt.s32.totalorder %s14, 2
      %s162 = scalar_select %p161, %s14, 2
      %s163 = smul.addr %s162, 16
      %s164 = smul.addr %s163, 4
      %s165 = scalar_lea.vmem %s2, %s164
      %p166 = scmp.lt.s32.totalorder %s14, 2
      %s167 = scalar_select %p166, %s14, 2
      %s168 = smul.addr %s167, 16
      %s169 = smul.addr %s168, 8
      %s170 = scalar_lea.vmem %s3, %s169
      %p172 = scmp.eq.s32.totalorder %s14, 0
      // Predicated region
      $region33: #{tpu_custom_call.1} parent=31 // pred_check
        %p173 = pneg %p172
      $region34: #{tpu_custom_call.1} parent=31 // pred_check_branch
        %175 = sbr.rel (%p173) target = $region36
      $region35: #{tpu_custom_call.1} parent=31 // pred_region
        %v176 = vld [vmem:[%s0] sm:$0xf]
        %v177 = vld [vmem:[%s0 + $0x4] sm:$0xf]
        %v178 = vld [vmem:[%s0 + $0x8] sm:$0xf]
        %v179 = vld [vmem:[%s0 + $0xc] sm:$0xf]
        %v180 = vld [vmem:[%s0 + $0x10] sm:$0xf]
        %v181 = vld [vmem:[%s0 + $0x14] sm:$0xf]
        %v182 = vld [vmem:[%s0 + $0x18] sm:$0xf]
        %v183 = vld [vmem:[%s0 + $0x1c] sm:$0xf]
        %v184 = vld [vmem:[%s0 + $0x20] sm:$0xf]
        %v185 = vld [vmem:[%s0 + $0x24] sm:$0xf]
        %v186 = vld [vmem:[%s0 + $0x28] sm:$0xf]
        %v187 = vld [vmem:[%s0 + $0x2c] sm:$0xf]
        %v188 = vld [vmem:[%s0 + $0x30] sm:$0xf]
        %v189 = vld [vmem:[%s0 + $0x34] sm:$0xf]
        %v190 = vld [vmem:[%s0 + $0x38] sm:$0xf]
        %v191 = vld [vmem:[%s0 + $0x3c] sm:$0xf]
        %v208 = vunpack.c.l.b16 %v176
        %v209 = vunpack.c.l.b16 %v177
        %v210 = vunpack.c.l.b16 %v178
        %v211 = vunpack.c.l.b16 %v179
        %v212 = vunpack.c.l.b16 %v180
        %v213 = vunpack.c.l.b16 %v181
        %v214 = vunpack.c.l.b16 %v182
        %v215 = vunpack.c.l.b16 %v183
        %v216 = vunpack.c.l.b16 %v184
        %v217 = vunpack.c.l.b16 %v185
        %v218 = vunpack.c.l.b16 %v186
        %v219 = vunpack.c.l.b16 %v187
        %v220 = vunpack.c.l.b16 %v188
        %v221 = vunpack.c.l.b16 %v189
        %v222 = vunpack.c.l.b16 %v190
        %v223 = vunpack.c.l.b16 %v191
        %v224 = vpack.c.b16 %v209, %v208
        %v225 = vpack.c.b16 %v211, %v210
        %v226 = vpack.c.b16 %v213, %v212
        %v227 = vpack.c.b16 %v215, %v214
        %v228 = vpack.c.b16 %v217, %v216
        %v229 = vpack.c.b16 %v219, %v218
        %v230 = vpack.c.b16 %v221, %v220
        %v231 = vpack.c.b16 %v223, %v222
        %240 = vst [vmem:[#allocation2] sm:$0xff] %v224
        %241 = vst [vmem:[#allocation2 + $0x8] sm:$0xff] %v225
        %242 = vst [vmem:[#allocation2 + $0x10] sm:$0xff] %v226
        %243 = vst [vmem:[#allocation2 + $0x18] sm:$0xff] %v227
        %244 = vst [vmem:[#allocation2 + $0x20] sm:$0xff] %v228
        %245 = vst [vmem:[#allocation2 + $0x28] sm:$0xff] %v229
        %246 = vst [vmem:[#allocation2 + $0x30] sm:$0xff] %v230
        %247 = vst [vmem:[#allocation2 + $0x38] sm:$0xff] %v231
        %v248 = vld [vmem:[%s0] sm:$0xf]
        %v249 = vld [vmem:[%s0 + $0x4] sm:$0xf]
        %v250 = vld [vmem:[%s0 + $0x8] sm:$0xf]
        %v251 = vld [vmem:[%s0 + $0xc] sm:$0xf]
        %v252 = vld [vmem:[%s0 + $0x10] sm:$0xf]
        %v253 = vld [vmem:[%s0 + $0x14] sm:$0xf]
        %v254 = vld [vmem:[%s0 + $0x18] sm:$0xf]
        %v255 = vld [vmem:[%s0 + $0x1c] sm:$0xf]
        %v256 = vld [vmem:[%s0 + $0x20] sm:$0xf]
        %v257 = vld [vmem:[%s0 + $0x24] sm:$0xf]
        %v258 = vld [vmem:[%s0 + $0x28] sm:$0xf]
        %v259 = vld [vmem:[%s0 + $0x2c] sm:$0xf]
        %v260 = vld [vmem:[%s0 + $0x30] sm:$0xf]
        %v261 = vld [vmem:[%s0 + $0x34] sm:$0xf]
        %v262 = vld [vmem:[%s0 + $0x38] sm:$0xf]
        %v263 = vld [vmem:[%s0 + $0x3c] sm:$0xf]
        %v264 = vld [vmem:[%s165] sm:$0xf]
        %v265 = vld [vmem:[%s165 + $0x4] sm:$0xf]
        %v266 = vld [vmem:[%s165 + $0x8] sm:$0xf]
        %v267 = vld [vmem:[%s165 + $0xc] sm:$0xf]
        %v268 = vld [vmem:[%s165 + $0x10] sm:$0xf]
        %v269 = vld [vmem:[%s165 + $0x14] sm:$0xf]
        %v270 = vld [vmem:[%s165 + $0x18] sm:$0xf]
        %v271 = vld [vmem:[%s165 + $0x1c] sm:$0xf]
        %v272 = vld [vmem:[%s165 + $0x20] sm:$0xf]
        %v273 = vld [vmem:[%s165 + $0x24] sm:$0xf]
        %v274 = vld [vmem:[%s165 + $0x28] sm:$0xf]
        %v275 = vld [vmem:[%s165 + $0x2c] sm:$0xf]
        %v276 = vld [vmem:[%s165 + $0x30] sm:$0xf]
        %v277 = vld [vmem:[%s165 + $0x34] sm:$0xf]
        %v278 = vld [vmem:[%s165 + $0x38] sm:$0xf]
        %v279 = vld [vmem:[%s165 + $0x3c] sm:$0xf]
        %v296 = vunpack.c.l.b16 %v248
        %v297 = vunpack.c.l.b16 %v249
        %v298 = vunpack.c.l.b16 %v250
        %v299 = vunpack.c.l.b16 %v251
        %v300 = vunpack.c.l.b16 %v252
        %v301 = vunpack.c.l.b16 %v253
        %v302 = vunpack.c.l.b16 %v254
        %v303 = vunpack.c.l.b16 %v255
        %v304 = vunpack.c.l.b16 %v256
        %v305 = vunpack.c.l.b16 %v257
        %v306 = vunpack.c.l.b16 %v258
        %v307 = vunpack.c.l.b16 %v259
        %v308 = vunpack.c.l.b16 %v260
        %v309 = vunpack.c.l.b16 %v261
        %v310 = vunpack.c.l.b16 %v262
        %v311 = vunpack.c.l.b16 %v263
        %v312 = vpack.c.b16 %v297, %v296
        %v313 = vpack.c.b16 %v299, %v298
        %v314 = vpack.c.b16 %v301, %v300
        %v315 = vpack.c.b16 %v303, %v302
        %v316 = vpack.c.b16 %v305, %v304
        %v317 = vpack.c.b16 %v307, %v306
        %v318 = vpack.c.b16 %v309, %v308
        %v319 = vpack.c.b16 %v311, %v310
        %v344 = vunpack.c.l.b16 %v264
        %v345 = vunpack.c.l.b16 %v265
        %v346 = vunpack.c.l.b16 %v266
        %v347 = vunpack.c.l.b16 %v267
        %v348 = vunpack.c.l.b16 %v268
        %v349 = vunpack.c.l.b16 %v269
        %v350 = vunpack.c.l.b16 %v270
        %v351 = vunpack.c.l.b16 %v271
        %v352 = vunpack.c.l.b16 %v272
        %v353 = vunpack.c.l.b16 %v273
        %v354 = vunpack.c.l.b16 %v274
        %v355 = vunpack.c.l.b16 %v275
        %v356 = vunpack.c.l.b16 %v276
        %v357 = vunpack.c.l.b16 %v277
        %v358 = vunpack.c.l.b16 %v278
        %v359 = vunpack.c.l.b16 %v279
        %v360 = vpack.c.b16 %v345, %v344
        %v361 = vpack.c.b16 %v347, %v346
        %v362 = vpack.c.b16 %v349, %v348
        %v363 = vpack.c.b16 %v351, %v350
        %v364 = vpack.c.b16 %v353, %v352
        %v365 = vpack.c.b16 %v355, %v354
        %v366 = vpack.c.b16 %v357, %v356
        %v367 = vpack.c.b16 %v359, %v358
        %376 = vmatprep.subr.bf16.mxu0 0
        %377 = vmatpush1.bf16.msra.mxu0 %v360
        %378 = vmatprep.subr.bf16.mxu0 0
        %379 = vmatpush1.bf16.msra.mxu0 %v361
        %380 = vmatprep.subr.bf16.mxu0 0
        %381 = vmatpush1.bf16.msra.mxu0 %v362
        %382 = vmatprep.subr.bf16.mxu0 0
        %383 = vmatpush1.bf16.msra.mxu0 %v363
        %384 = vmatprep.subr.bf16.mxu0 0
        %385 = vmatpush1.bf16.msra.mxu0 %v364
        %386 = vmatprep.subr.bf16.mxu0 0
        %387 = vmatpush1.bf16.msra.mxu0 %v365
        %388 = vmatprep.subr.bf16.mxu0 0
        %389 = vmatpush1.bf16.msra.mxu0 %v366
        %390 = vmatprep.subr.bf16.mxu0 0
        %391 = vmatpush1.bf16.msra.mxu0 %v367
        %392 = vmatprep.subr.bf16.mxu0 0
        %393 = vmatpush1.bf16.msra.mxu0 0
        %394 = vmatprep.subr.bf16.mxu0 0
        %395 = vmatpush1.bf16.msra.mxu0 0
        %396 = vmatprep.subr.bf16.mxu0 0
        %397 = vmatpush1.bf16.msra.mxu0 0
        %398 = vmatprep.subr.bf16.mxu0 0
        %399 = vmatpush1.bf16.msra.mxu0 0
        %400 = vmatprep.subr.bf16.mxu0 0
        %401 = vmatpush1.bf16.msra.mxu0 0
        %402 = vmatprep.subr.bf16.mxu0 0
        %403 = vmatpush1.bf16.msra.mxu0 0
        %404 = vmatprep.subr.bf16.mxu0 0
        %405 = vmatpush1.bf16.msra.mxu0 0
        %406 = vmatprep.subr.bf16.mxu0 0
        %407 = vmatpush1.bf16.msra.mxu0 0
        %408 = vmatprep.mubr.bf16.mxu0 0
        %409 = vmatmul.mubr.bf16.gmra.mrb[0].mxu0 %v312
        %v410 = vpop.f32.mrb[0].mxu0
        %v411 = vadd.f32 0.0, %v410
        %v412 = vpop.f32.mrb[0].mxu0
        %v413 = vpop.f32.mrb[0].mxu0
        %v414 = vadd.f32 0.0, %v413
        %v415 = vpop.f32.mrb[0].mxu0
        %416 = vmatprep.mubr.bf16.mxu0 0
        %417 = vmatmul.mubr.bf16.gmra.mrb[0].mxu0 %v313
        %v418 = vpop.f32.mrb[0].mxu0
        %v419 = vadd.f32 0.0, %v418
        %v420 = vpop.f32.mrb[0].mxu0
        %v421 = vpop.f32.mrb[0].mxu0
        %v422 = vadd.f32 0.0, %v421
        %v423 = vpop.f32.mrb[0].mxu0
        %424 = vmatprep.mubr.bf16.mxu0 0
        %425 = vmatmul.mubr.bf16.gmra.mrb[0].mxu0 %v314
        %v426 = vpop.f32.mrb[0].mxu0
        %v427 = vadd.f32 0.0, %v426
        %v428 = vpop.f32.mrb[0].mxu0
        %v429 = vpop.f32.mrb[0].mxu0
        %v430 = vadd.f32 0.0, %v429
        %v431 = vpop.f32.mrb[0].mxu0
        %432 = vmatprep.mubr.bf16.mxu0 0
        %433 = vmatmul.mubr.bf16.gmra.mrb[0].mxu0 %v315
        %v434 = vpop.f32.mrb[0].mxu0
        %v435 = vadd.f32 0.0, %v434
        %v436 = vpop.f32.mrb[0].mxu0
        %v437 = vpop.f32.mrb[0].mxu0
        %v438 = vadd.f32 0.0, %v437
        %v439 = vpop.f32.mrb[0].mxu0
        %440 = vmatprep.mubr.bf16.mxu0 0
        %441 = vmatmul.mubr.bf16.gmra.mrb[0].mxu0 %v316
        %v442 = vpop.f32.mrb[0].mxu0
        %v443 = vadd.f32 0.0, %v442
        %v444 = vpop.f32.mrb[0].mxu0
        %v445 = vpop.f32.mrb[0].mxu0
        %v446 = vadd.f32 0.0, %v445
        %v447 = vpop.f32.mrb[0].mxu0
        %448 = vmatprep.mubr.bf16.mxu0 0
        %449 = vmatmul.mubr.bf16.gmra.mrb[0].mxu0 %v317
        %v450 = vpop.f32.mrb[0].mxu0
        %v451 = vadd.f32 0.0, %v450
        %v452 = vpop.f32.mrb[0].mxu0
        %v453 = vpop.f32.mrb[0].mxu0
        %v454 = vadd.f32 0.0, %v453
        %v455 = vpop.f32.mrb[0].mxu0
        %456 = vmatprep.mubr.bf16.mxu0 0
        %457 = vmatmul.mubr.bf16.gmra.mrb[0].mxu0 %v318
        %v458 = vpop.f32.mrb[0].mxu0
        %v459 = vadd.f32 0.0, %v458
        %v460 = vpop.f32.mrb[0].mxu0
        %v461 = vpop.f32.mrb[0].mxu0
        %v462 = vadd.f32 0.0, %v461
        %v463 = vpop.f32.mrb[0].mxu0
        %464 = vmatprep.mubr.bf16.mxu0 0
        %465 = vmatmul.mubr.bf16.gmra.mrb[0].mxu0 %v319
        %v466 = vpop.f32.mrb[0].mxu0
        %v467 = vadd.f32 0.0, %v466
        %v468 = vpop.f32.mrb[0].mxu0
        %v469 = vpop.f32.mrb[0].mxu0
        %v470 = vadd.f32 0.0, %v469
        %v471 = vpop.f32.mrb[0].mxu0
        %472 = vdwg.mxu0
        %vm473 = vcmask 261120
        %474 = vst.msk [vmem:[%s170] sm:$0xff] %vm473, %v411
        %475 = vst.msk [vmem:[%s170 + $0x8] sm:$0xff] %vm473, %v414
        %476 = vst.msk [vmem:[%s170 + $0x10] sm:$0xff] %vm473, %v419
        %477 = vst.msk [vmem:[%s170 + $0x18] sm:$0xff] %vm473, %v422
        %478 = vst.msk [vmem:[%s170 + $0x20] sm:$0xff] %vm473, %v427
        %479 = vst.msk [vmem:[%s170 + $0x28] sm:$0xff] %vm473, %v430
        %480 = vst.msk [vmem:[%s170 + $0x30] sm:$0xff] %vm473, %v435
        %481 = vst.msk [vmem:[%s170 + $0x38] sm:$0xff] %vm473, %v438
        %482 = vst.msk [vmem:[%s170 + $0x40] sm:$0xff] %vm473, %v443
        %483 = vst.msk [vmem:[%s170 + $0x48] sm:$0xff] %vm473, %v446
        %484 = vst.msk [vmem:[%s170 + $0x50] sm:$0xff] %vm473, %v451
        %485 = vst.msk [vmem:[%s170 + $0x58] sm:$0xff] %vm473, %v454
        %486 = vst.msk [vmem:[%s170 + $0x60] sm:$0xff] %vm473, %v459
        %487 = vst.msk [vmem:[%s170 + $0x68] sm:$0xff] %vm473, %v462
        %488 = vst.msk [vmem:[%s170 + $0x70] sm:$0xff] %vm473, %v467
        %489 = vst.msk [vmem:[%s170 + $0x78] sm:$0xff] %vm473, %v470
      $region36: #{tpu_custom_call.1} parent=31 // pred_fallthru
        _
      %p490 = scmp.gt.s32.totalorder %s14, 0
      // Predicated region
      $region37: #{tpu_custom_call.1} parent=31 // pred_check
        %p491 = pneg %p490
      $region38: #{tpu_custom_call.1} parent=31 // pred_check_branch
        %493 = sbr.rel (%p491) target = $region40
      $region39: #{tpu_custom_call.1} parent=31 // pred_region
        %v494 = vld [vmem:[%s1] sm:$0xf]
        %v495 = vld [vmem:[%s1 + $0x4] sm:$0xf]
        %v496 = vld [vmem:[%s1 + $0x8] sm:$0xf]
        %v497 = vld [vmem:[%s1 + $0xc] sm:$0xf]
        %v498 = vld [vmem:[%s1 + $0x10] sm:$0xf]
        %v499 = vld [vmem:[%s1 + $0x14] sm:$0xf]
        %v500 = vld [vmem:[%s1 + $0x18] sm:$0xf]
        %v501 = vld [vmem:[%s1 + $0x1c] sm:$0xf]
        %v502 = vld [vmem:[%s1 + $0x20] sm:$0xf]
        %v503 = vld [vmem:[%s1 + $0x24] sm:$0xf]
        %v504 = vld [vmem:[%s1 + $0x28] sm:$0xf]
        %v505 = vld [vmem:[%s1 + $0x2c] sm:$0xf]
        %v506 = vld [vmem:[%s1 + $0x30] sm:$0xf]
        %v507 = vld [vmem:[%s1 + $0x34] sm:$0xf]
        %v508 = vld [vmem:[%s1 + $0x38] sm:$0xf]
        %v509 = vld [vmem:[%s1 + $0x3c] sm:$0xf]
        %v510 = vld [vmem:[#allocation2] sm:$0xff]
        %v511 = vld [vmem:[#allocation2 + $0x8] sm:$0xff]
        %v512 = vld [vmem:[#allocation2 + $0x10] sm:$0xff]
        %v513 = vld [vmem:[#allocation2 + $0x18] sm:$0xff]
        %v514 = vld [vmem:[#allocation2 + $0x20] sm:$0xff]
        %v515 = vld [vmem:[#allocation2 + $0x28] sm:$0xff]
        %v516 = vld [vmem:[#allocation2 + $0x30] sm:$0xff]
        %v517 = vld [vmem:[#allocation2 + $0x38] sm:$0xff]
        %v534 = vunpack.c.l.b16 %v494
        %v535 = vunpack.c.l.b16 %v495
        %v536 = vunpack.c.l.b16 %v496
        %v537 = vunpack.c.l.b16 %v497
        %v538 = vunpack.c.l.b16 %v498
        %v539 = vunpack.c.l.b16 %v499
        %v540 = vunpack.c.l.b16 %v500
        %v541 = vunpack.c.l.b16 %v501
        %v542 = vunpack.c.l.b16 %v502
        %v543 = vunpack.c.l.b16 %v503
        %v544 = vunpack.c.l.b16 %v504
        %v545 = vunpack.c.l.b16 %v505
        %v546 = vunpack.c.l.b16 %v506
        %v547 = vunpack.c.l.b16 %v507
        %v548 = vunpack.c.l.b16 %v508
        %v549 = vunpack.c.l.b16 %v509
        %v550 = vpack.c.b16 %v535, %v534
        %v551 = vpack.c.b16 %v537, %v536
        %v552 = vpack.c.b16 %v539, %v538
        %v553 = vpack.c.b16 %v541, %v540
        %v554 = vpack.c.b16 %v543, %v542
        %v555 = vpack.c.b16 %v545, %v544
        %v556 = vpack.c.b16 %v547, %v546
        %v557 = vpack.c.b16 %v549, %v548
        %566 = vmatprep.subr.bf16.mxu0 0
        %567 = vmatpush1.bf16.msra.mxu0 %v510
        %568 = vmatprep.subr.bf16.mxu0 0
        %569 = vmatpush1.bf16.msra.mxu0 %v511
        %570 = vmatprep.subr.bf16.mxu0 0
        %571 = vmatpush1.bf16.msra.mxu0 %v512
        %572 = vmatprep.subr.bf16.mxu0 0
        %573 = vmatpush1.bf16.msra.mxu0 %v513
        %574 = vmatprep.subr.bf16.mxu0 0
        %575 = vmatpush1.bf16.msra.mxu0 %v514
        %576 = vmatprep.subr.bf16.mxu0 0
        %577 = vmatpush1.bf16.msra.mxu0 %v515
        %578 = vmatprep.subr.bf16.mxu0 0
        %579 = vmatpush1.bf16.msra.mxu0 %v516
        %580 = vmatprep.subr.bf16.mxu0 0
        %581 = vmatpush1.bf16.msra.mxu0 %v517
        %582 = vmatprep.subr.bf16.mxu0 0
        %583 = vmatpush1.bf16.msra.mxu0 0
        %584 = vmatprep.subr.bf16.mxu0 0
        %585 = vmatpush1.bf16.msra.mxu0 0
        %586 = vmatprep.subr.bf16.mxu0 0
        %587 = vmatpush1.bf16.msra.mxu0 0
        %588 = vmatprep.subr.bf16.mxu0 0
        %589 = vmatpush1.bf16.msra.mxu0 0
        %590 = vmatprep.subr.bf16.mxu0 0
        %591 = vmatpush1.bf16.msra.mxu0 0
        %592 = vmatprep.subr.bf16.mxu0 0
        %593 = vmatpush1.bf16.msra.mxu0 0
        %594 = vmatprep.subr.bf16.mxu0 0
        %595 = vmatpush1.bf16.msra.mxu0 0
        %596 = vmatprep.subr.bf16.mxu0 0
        %597 = vmatpush1.bf16.msra.mxu0 0
        %598 = vmatprep.mubr.bf16.mxu0 0
        %599 = vmatmul.mubr.bf16.gmra.mrb[0].mxu0 %v550
        %v600 = vpop.f32.mrb[0].mxu0
        %v601 = vadd.f32 0.0, %v600
        %v602 = vpop.f32.mrb[0].mxu0
        %v603 = vpop.f32.mrb[0].mxu0
        %v604 = vadd.f32 0.0, %v603
        %v605 = vpop.f32.mrb[0].mxu0
        %606 = vmatprep.mubr.bf16.mxu0 0
        %607 = vmatmul.mubr.bf16.gmra.mrb[0].mxu0 %v551
        %v608 = vpop.f32.mrb[0].mxu0
        %v609 = vadd.f32 0.0, %v608
        %v610 = vpop.f32.mrb[0].mxu0
        %v611 = vpop.f32.mrb[0].mxu0
        %v612 = vadd.f32 0.0, %v611
        %v613 = vpop.f32.mrb[0].mxu0
        %614 = vmatprep.mubr.bf16.mxu0 0
        %615 = vmatmul.mubr.bf16.gmra.mrb[0].mxu0 %v552
        %v616 = vpop.f32.mrb[0].mxu0
        %v617 = vadd.f32 0.0, %v616
        %v618 = vpop.f32.mrb[0].mxu0
        %v619 = vpop.f32.mrb[0].mxu0
        %v620 = vadd.f32 0.0, %v619
        %v621 = vpop.f32.mrb[0].mxu0
        %622 = vmatprep.mubr.bf16.mxu0 0
        %623 = vmatmul.mubr.bf16.gmra.mrb[0].mxu0 %v553
        %v624 = vpop.f32.mrb[0].mxu0
        %v625 = vadd.f32 0.0, %v624
        %v626 = vpop.f32.mrb[0].mxu0
        %v627 = vpop.f32.mrb[0].mxu0
        %v628 = vadd.f32 0.0, %v627
        %v629 = vpop.f32.mrb[0].mxu0
        %630 = vmatprep.mubr.bf16.mxu0 0
        %631 = vmatmul.mubr.bf16.gmra.mrb[0].mxu0 %v554
        %v632 = vpop.f32.mrb[0].mxu0
        %v633 = vadd.f32 0.0, %v632
        %v634 = vpop.f32.mrb[0].mxu0
        %v635 = vpop.f32.mrb[0].mxu0
        %v636 = vadd.f32 0.0, %v635
        %v637 = vpop.f32.mrb[0].mxu0
        %638 = vmatprep.mubr.bf16.mxu0 0
        %639 = vmatmul.mubr.bf16.gmra.mrb[0].mxu0 %v555
        %v640 = vpop.f32.mrb[0].mxu0
        %v641 = vadd.f32 0.0, %v640
        %v642 = vpop.f32.mrb[0].mxu0
        %v643 = vpop.f32.mrb[0].mxu0
        %v644 = vadd.f32 0.0, %v643
        %v645 = vpop.f32.mrb[0].mxu0
        %646 = vmatprep.mubr.bf16.mxu0 0
        %647 = vmatmul.mubr.bf16.gmra.mrb[0].mxu0 %v556
        %v648 = vpop.f32.mrb[0].mxu0
        %v649 = vadd.f32 0.0, %v648
        %v650 = vpop.f32.mrb[0].mxu0
        %v651 = vpop.f32.mrb[0].mxu0
        %v652 = vadd.f32 0.0, %v651
        %v653 = vpop.f32.mrb[0].mxu0
        %654 = vmatprep.mubr.bf16.mxu0 0
        %655 = vmatmul.mubr.bf16.gmra.mrb[0].mxu0 %v557
        %v656 = vpop.f32.mrb[0].mxu0
        %v657 = vadd.f32 0.0, %v656
        %v658 = vpop.f32.mrb[0].mxu0
        %v659 = vpop.f32.mrb[0].mxu0
        %v660 = vadd.f32 0.0, %v659
        %v661 = vpop.f32.mrb[0].mxu0
        %662 = vdwg.mxu0
        %v663 = vpack.c.bf16 %v604, %v601
        %v664 = vpack.c.bf16 %v612, %v609
        %v665 = vpack.c.bf16 %v620, %v617
        %v666 = vpack.c.bf16 %v628, %v625
        %v667 = vpack.c.bf16 %v636, %v633
        %v668 = vpack.c.bf16 %v644, %v641
        %v669 = vpack.c.bf16 %v652, %v649
        %v670 = vpack.c.bf16 %v660, %v657
        %671 = vst [vmem:[#allocation2] sm:$0xff] %v663
        %672 = vst [vmem:[#allocation2 + $0x8] sm:$0xff] %v664
        %673 = vst [vmem:[#allocation2 + $0x10] sm:$0xff] %v665
        %674 = vst [vmem:[#allocation2 + $0x18] sm:$0xff] %v666
        %675 = vst [vmem:[#allocation2 + $0x20] sm:$0xff] %v667
        %676 = vst [vmem:[#allocation2 + $0x28] sm:$0xff] %v668
        %677 = vst [vmem:[#allocation2 + $0x30] sm:$0xff] %v669
        %678 = vst [vmem:[#allocation2 + $0x38] sm:$0xff] %v670
        %v679 = vld [vmem:[%s165] sm:$0xf]
        %v680 = vld [vmem:[%s165 + $0x4] sm:$0xf]
        %v681 = vld [vmem:[%s165 + $0x8] sm:$0xf]
        %v682 = vld [vmem:[%s165 + $0xc] sm:$0xf]
        %v683 = vld [vmem:[%s165 + $0x10] sm:$0xf]
        %v684 = vld [vmem:[%s165 + $0x14] sm:$0xf]
        %v685 = vld [vmem:[%s165 + $0x18] sm:$0xf]
        %v686 = vld [vmem:[%s165 + $0x1c] sm:$0xf]
        %v687 = vld [vmem:[%s165 + $0x20] sm:$0xf]
        %v688 = vld [vmem:[%s165 + $0x24] sm:$0xf]
        %v689 = vld [vmem:[%s165 + $0x28] sm:$0xf]
        %v690 = vld [vmem:[%s165 + $0x2c] sm:$0xf]
        %v691 = vld [vmem:[%s165 + $0x30] sm:$0xf]
        %v692 = vld [vmem:[%s165 + $0x34] sm:$0xf]
        %v693 = vld [vmem:[%s165 + $0x38] sm:$0xf]
        %v694 = vld [vmem:[%s165 + $0x3c] sm:$0xf]
        %v711 = vunpack.c.l.b16 %v679
        %v712 = vunpack.c.l.b16 %v680
        %v713 = vunpack.c.l.b16 %v681
        %v714 = vunpack.c.l.b16 %v682
        %v715 = vunpack.c.l.b16 %v683
        %v716 = vunpack.c.l.b16 %v684
        %v717 = vunpack.c.l.b16 %v685
        %v718 = vunpack.c.l.b16 %v686
        %v719 = vunpack.c.l.b16 %v687
        %v720 = vunpack.c.l.b16 %v688
        %v721 = vunpack.c.l.b16 %v689
        %v722 = vunpack.c.l.b16 %v690
        %v723 = vunpack.c.l.b16 %v691
        %v724 = vunpack.c.l.b16 %v692
        %v725 = vunpack.c.l.b16 %v693
        %v726 = vunpack.c.l.b16 %v694
        %v727 = vpack.c.b16 %v712, %v711
        %v728 = vpack.c.b16 %v714, %v713
        %v729 = vpack.c.b16 %v716, %v715
        %v730 = vpack.c.b16 %v718, %v717
        %v731 = vpack.c.b16 %v720, %v719
        %v732 = vpack.c.b16 %v722, %v721
        %v733 = vpack.c.b16 %v724, %v723
        %v734 = vpack.c.b16 %v726, %v725
        %743 = vmatprep.subr.bf16.mxu0 0
        %744 = vmatpush1.bf16.msra.mxu0 %v727
        %745 = vmatprep.subr.bf16.mxu0 0
        %746 = vmatpush1.bf16.msra.mxu0 %v728
        %747 = vmatprep.subr.bf16.mxu0 0
        %748 = vmatpush1.bf16.msra.mxu0 %v729
        %749 = vmatprep.subr.bf16.mxu0 0
        %750 = vmatpush1.bf16.msra.mxu0 %v730
        %751 = vmatprep.subr.bf16.mxu0 0
        %752 = vmatpush1.bf16.msra.mxu0 %v731
        %753 = vmatprep.subr.bf16.mxu0 0
        %754 = vmatpush1.bf16.msra.mxu0 %v732
        %755 = vmatprep.subr.bf16.mxu0 0
        %756 = vmatpush1.bf16.msra.mxu0 %v733
        %757 = vmatprep.subr.bf16.mxu0 0
        %758 = vmatpush1.bf16.msra.mxu0 %v734
        %759 = vmatprep.subr.bf16.mxu0 0
        %760 = vmatpush1.bf16.msra.mxu0 0
        %761 = vmatprep.subr.bf16.mxu0 0
        %762 = vmatpush1.bf16.msra.mxu0 0
        %763 = vmatprep.subr.bf16.mxu0 0
        %764 = vmatpush1.bf16.msra.mxu0 0
        %765 = vmatprep.subr.bf16.mxu0 0
        %766 = vmatpush1.bf16.msra.mxu0 0
        %767 = vmatprep.subr.bf16.mxu0 0
        %768 = vmatpush1.bf16.msra.mxu0 0
        %769 = vmatprep.subr.bf16.mxu0 0
        %770 = vmatpush1.bf16.msra.mxu0 0
        %771 = vmatprep.subr.bf16.mxu0 0
        %772 = vmatpush1.bf16.msra.mxu0 0
        %773 = vmatprep.subr.bf16.mxu0 0
        %774 = vmatpush1.bf16.msra.mxu0 0
        %775 = vmatprep.mubr.bf16.mxu0 0
        %776 = vmatmul.mubr.bf16.gmra.mrb[0].mxu0 %v663
        %v777 = vpop.f32.mrb[0].mxu0
        %v778 = vadd.f32 0.0, %v777
        %v779 = vpop.f32.mrb[0].mxu0
        %v780 = vpop.f32.mrb[0].mxu0
        %v781 = vadd.f32 0.0, %v780
        %v782 = vpop.f32.mrb[0].mxu0
        %783 = vmatprep.mubr.bf16.mxu0 0
        %784 = vmatmul.mubr.bf16.gmra.mrb[0].mxu0 %v664
        %v785 = vpop.f32.mrb[0].mxu0
        %v786 = vadd.f32 0.0, %v785
        %v787 = vpop.f32.mrb[0].mxu0
        %v788 = vpop.f32.mrb[0].mxu0
        %v789 = vadd.f32 0.0, %v788
        %v790 = vpop.f32.mrb[0].mxu0
        %791 = vmatprep.mubr.bf16.mxu0 0
        %792 = vmatmul.mubr.bf16.gmra.mrb[0].mxu0 %v665
        %v793 = vpop.f32.mrb[0].mxu0
        %v794 = vadd.f32 0.0, %v793
        %v795 = vpop.f32.mrb[0].mxu0
        %v796 = vpop.f32.mrb[0].mxu0
        %v797 = vadd.f32 0.0, %v796
        %v798 = vpop.f32.mrb[0].mxu0
        %799 = vmatprep.mubr.bf16.mxu0 0
        %800 = vmatmul.mubr.bf16.gmra.mrb[0].mxu0 %v666
        %v801 = vpop.f32.mrb[0].mxu0
        %v802 = vadd.f32 0.0, %v801
        %v803 = vpop.f32.mrb[0].mxu0
        %v804 = vpop.f32.mrb[0].mxu0
        %v805 = vadd.f32 0.0, %v804
        %v806 = vpop.f32.mrb[0].mxu0
        %807 = vmatprep.mubr.bf16.mxu0 0
        %808 = vmatmul.mubr.bf16.gmra.mrb[0].mxu0 %v667
        %v809 = vpop.f32.mrb[0].mxu0
        %v810 = vadd.f32 0.0, %v809
        %v811 = vpop.f32.mrb[0].mxu0
        %v812 = vpop.f32.mrb[0].mxu0
        %v813 = vadd.f32 0.0, %v812
        %v814 = vpop.f32.mrb[0].mxu0
        %815 = vmatprep.mubr.bf16.mxu0 0
        %816 = vmatmul.mubr.bf16.gmra.mrb[0].mxu0 %v668
        %v817 = vpop.f32.mrb[0].mxu0
        %v818 = vadd.f32 0.0, %v817
        %v819 = vpop.f32.mrb[0].mxu0
        %v820 = vpop.f32.mrb[0].mxu0
        %v821 = vadd.f32 0.0, %v820
        %v822 = vpop.f32.mrb[0].mxu0
        %823 = vmatprep.mubr.bf16.mxu0 0
        %824 = vmatmul.mubr.bf16.gmra.mrb[0].mxu0 %v669
        %v825 = vpop.f32.mrb[0].mxu0
        %v826 = vadd.f32 0.0, %v825
        %v827 = vpop.f32.mrb[0].mxu0
        %v828 = vpop.f32.mrb[0].mxu0
        %v829 = vadd.f32 0.0, %v828
        %v830 = vpop.f32.mrb[0].mxu0
        %831 = vmatprep.mubr.bf16.mxu0 0
        %832 = vmatmul.mubr.bf16.gmra.mrb[0].mxu0 %v670
        %v833 = vpop.f32.mrb[0].mxu0
        %v834 = vadd.f32 0.0, %v833
        %v835 = vpop.f32.mrb[0].mxu0
        %v836 = vpop.f32.mrb[0].mxu0
        %v837 = vadd.f32 0.0, %v836
        %v838 = vpop.f32.mrb[0].mxu0
        %839 = vdwg.mxu0
        %vm840 = vcmask 261120
        %841 = vst.msk [vmem:[%s170] sm:$0xff] %vm840, %v778
        %842 = vst.msk [vmem:[%s170 + $0x8] sm:$0xff] %vm840, %v781
        %843 = vst.msk [vmem:[%s170 + $0x10] sm:$0xff] %vm840, %v786
        %844 = vst.msk [vmem:[%s170 + $0x18] sm:$0xff] %vm840, %v789
        %845 = vst.msk [vmem:[%s170 + $0x20] sm:$0xff] %vm840, %v794
        %846 = vst.msk [vmem:[%s170 + $0x28] sm:$0xff] %vm840, %v797
        %847 = vst.msk [vmem:[%s170 + $0x30] sm:$0xff] %vm840, %v802
        %848 = vst.msk [vmem:[%s170 + $0x38] sm:$0xff] %vm840, %v805
        %849 = vst.msk [vmem:[%s170 + $0x40] sm:$0xff] %vm840, %v810
        %850 = vst.msk [vmem:[%s170 + $0x48] sm:$0xff] %vm840, %v813
        %851 = vst.msk [vmem:[%s170 + $0x50] sm:$0xff] %vm840, %v818
        %852 = vst.msk [vmem:[%s170 + $0x58] sm:$0xff] %vm840, %v821
        %853 = vst.msk [vmem:[%s170 + $0x60] sm:$0xff] %vm840, %v826
        %854 = vst.msk [vmem:[%s170 + $0x68] sm:$0xff] %vm840, %v829
        %855 = vst.msk [vmem:[%s170 + $0x70] sm:$0xff] %vm840, %v834
        %856 = vst.msk [vmem:[%s170 + $0x78] sm:$0xff] %vm840, %v837
      $region40: #{tpu_custom_call.1} parent=31 // pred_fallthru
        _
      %p857 = scmp.lt.s32.totalorder %s14, 2
      %s858 = scalar_select %p857, %s14, 2
      %s859 = smul.addr %s858, 16
      %s860 = smul.addr %s859, 8
      %s861 = scalar_lea.vmem %s3, %s860
      // Predicated region
      $region41: #{tpu_custom_call.1} parent=31 // pred_check
        %p862 = pneg %p100
      $region42: #{tpu_custom_call.1} parent=31 // pred_check_branch
        %864 = sbr.rel (%p862) target = $region44
      $region43: #{tpu_custom_call.1} parent=31 // pred_region
        _
      $region44: #{tpu_custom_call.1} parent=31 // pred_fallthru
        _
    $region32: #{tpu_custom_call.1} parent=5 // pred_fallthru
      _
    %p865 = scmp.le.s32.totalorder 2, %s9
    // Predicated region
    $region45: #{tpu_custom_call.1} parent=5 // pred_check
      %p866 = pneg %p865
    $region46: #{tpu_custom_call.1} parent=5 // pred_check_branch
      %868 = sbr.rel (%p866) target = $region48
    $region47: #{tpu_custom_call.1} parent=5 // pred_region
      %s869 = ssub.s32 %s9, 2
      // Predicated region
      $region49: #{tpu_custom_call.1} parent=47 // pred_check
        %p870 = pneg %p106
      $region50: #{tpu_custom_call.1} parent=47 // pred_check_branch
        %872 = sbr.rel (%p870) target = $region52
      $region51: #{tpu_custom_call.1} parent=47 // pred_region
        %p873 = scmp.lt.s32.totalorder %s15, 2
        %s874 = scalar_select %p873, %s15, 2
        %s875 = smul.addr %s874, 16
        %s876 = smul.addr %s875, 8
        %s877 = scalar_lea.vmem %s3, %s876
      $region52: #{tpu_custom_call.1} parent=47 // pred_fallthru
        _
    $region48: #{tpu_custom_call.1} parent=5 // pred_fallthru
      _
  $region6: #{tpu_custom_call.1} parent=0 // loop_footer
    %s13 = sadd.s32 1, %s9
  $region7: #{tpu_custom_call.1} parent=0 // loop_footer_branch
    %8 = sbr.rel target = $region3
  $region8: #{tpu_custom_call.1} parent=0 // loop_exit
    _

</llo_original>
